<compile_context>
chip_gen: v5e
topology: v5e:2x2
jax: 0.10.0
libtpu: 0.0.40
codegen_flags: <defaults>
</compile_context>

<pallas_src>
import functools

import jax
import jax.numpy as jnp
import numpy as np
from jax.experimental import pallas as pl
from jax.experimental.pallas import tpu as pltpu

LANE = 128


def _sublane_req(dtype):
    """Sublane alignment for the second-to-last dim: f32 -> 8, bf16 -> 16, 8-bit -> 32."""
    itemsize = jnp.dtype(dtype).itemsize
    return 8 * max(1, 4 // itemsize)


def _ceil_to(v, m):
    return ((v + m - 1) // m) * m


@functools.lru_cache(maxsize=None)
def _vmem_capacity_bytes():
    try:
        return int(pltpu.get_tpu_info().vmem_capacity_bytes)
    except Exception:
        return 64 * 1024 * 1024  # conservative fallback (v7x per-core VMEM)


# ------------------------------- kernels -----------------------------------
def _act_fused_kernel(x_ref, o_ref):
    """Whole (small) tensor resident in VMEM: y = tanh(3*x / (max|x| + 1))."""
    x = x_ref[...].astype(jnp.float32)            # cast in-kernel; I/O stays native dtype
    m = jnp.max(jnp.abs(x), keepdims=True)        # (1, 1) global abs-max
    scale = 3.0 / (m + 1.0)                       # exact (single scalar, free)
    o_ref[...] = jnp.tanh(x * scale).astype(o_ref.dtype)


def _absmax_partial_kernel(x_ref, m_ref, *, block_rows, total_rows, needs_mask):
    """Tiled pass 1: per-block partial abs-max -> (1,1,1) block (parallel across blocks)."""
    ax = jnp.abs(x_ref[...].astype(jnp.float32))
    if needs_mask:
        # Partial boundary block: out-of-range rows hold unspecified data.
        row0 = pl.program_id(0) * block_rows
        rid = row0 + jax.lax.broadcasted_iota(jnp.int32, ax.shape, 0)
        ax = jnp.where(rid < total_rows, ax, 0.0)
    m_ref[...] = jnp.max(ax, keepdims=True).reshape(1, 1, 1)


def _scale_tanh_kernel(scale_ref, x_ref, o_ref):
    """Tiled pass 2: y = tanh(x * scale); scale = 3/(global_max + 1) lives in SMEM."""
    s = scale_ref[0]                               # scalar SMEM read, once per tile
    o_ref[...] = jnp.tanh(x_ref[...].astype(jnp.float32) * s).astype(o_ref.dtype)


# ------------------------------- wrapper ------------------------------------
@functools.partial(jax.jit, static_argnames=("block_rows", "force_tiled"))
def activation_forward(x, *, block_rows=None, force_tiled=False):
    """Activation.forward: tanh(3*x / (|x|.max() + 1)) for any input shape/dtype."""
    orig_shape = x.shape
    dtype = x.dtype
    n = x.size
    if n == 0:
        return x

    sub = _sublane_req(dtype)
    align = sub * LANE

    flat = x.reshape(-1)                           # free metadata reshape, native dtype
    padded_n = _ceil_to(n, align)
    if padded_n != n:
        # TODO(synk): rare ragged-tail fallback costs one pad + one slice copy;
        # could be removed entirely with in-kernel tail masking of a 1-D view.
        flat = jnp.pad(flat, (0, padded_n - n))
    rows = padded_n // LANE
    x2d = flat.reshape(rows, LANE)                 # lane-dense, contiguous, no copy

    vmem_cap = _vmem_capacity_bytes()
    vmem_limit = int(min(vmem_cap // 2, 48 * 1024 * 1024))
    fused_limit = int(min(2 * 1024 * 1024, vmem_cap // 32))  # f32-equiv slab bytes
    slab_f32_bytes = rows * LANE * 4

    if not force_tiled and slab_f32_bytes <= fused_limit:
        # ---- small tensors: one fused, fully VMEM-resident kernel ----
        y2d = pl.pallas_call(
            _act_fused_kernel,
            out_shape=jax.ShapeDtypeStruct((rows, LANE), dtype),
            in_specs=[pl.BlockSpec(memory_space=pltpu.MemorySpace.VMEM)],
            out_specs=pl.BlockSpec(memory_space=pltpu.MemorySpace.VMEM),
            compiler_params=pltpu.CompilerParams(vmem_limit_bytes=vmem_limit),
        )(x2d)
    else:
        # ---- tiled two-pass path: global max must NOT become per-block ----
        tr = int(block_rows) if block_rows is not None else 4096   # ~2 MiB f32 tiles
        tr = max(sub, (tr // sub) * sub)
        tr = min(tr, rows)                         # rows is already a multiple of `sub`
        grid = pl.cdiv(rows, tr)
        needs_mask = (rows % tr) != 0

        # pass 1: per-block partial abs-max (parallel, no serialized accumulator)
        partial = pl.pallas_call(
            functools.partial(_absmax_partial_kernel, block_rows=tr,
                              total_rows=rows, needs_mask=needs_mask),
            out_shape=jax.ShapeDtypeStruct((grid, 1, 1), jnp.float32),
            grid=(grid,),
            in_specs=[pl.BlockSpec((tr, LANE), lambda i: (i, 0))],
            out_specs=pl.BlockSpec((1, 1, 1), lambda i: (i, 0, 0)),
            compiler_params=pltpu.CompilerParams(
                dimension_semantics=("parallel",),
                vmem_limit_bytes=vmem_limit),
        )(x2d)

        # tiny XLA combine + exact scalar math, hoisted out of the per-tile loop
        m = jnp.max(partial)
        scale = (3.0 / (m + 1.0)).astype(jnp.float32).reshape(1)

        # pass 2: normalize + tanh, embarrassingly parallel over row blocks
        y2d = pl.pallas_call(
            _scale_tanh_kernel,
            out_shape=jax.ShapeDtypeStruct((rows, LANE), dtype),
            grid=(grid,),
            in_specs=[pl.BlockSpec(memory_space=pltpu.MemorySpace.SMEM),
                      pl.BlockSpec((tr, LANE), lambda i: (i, 0))],
            out_specs=pl.BlockSpec((tr, LANE), lambda i: (i, 0)),
            compiler_params=pltpu.CompilerParams(
                dimension_semantics=("parallel",),
                vmem_limit_bytes=vmem_limit),
        )(scale, x2d)

    y = y2d.reshape(-1)
    if padded_n != n:
        y = y[:n]
    return y.reshape(orig_shape)


# --------------------------------- main -------------------------------------
if __name__ == "__main__":
    k0, k1, k2 = jax.random.split(jax.random.PRNGKey(0), 3)

    def ref_fn(v):
        v32 = v.astype(jnp.float32)
        return jnp.tanh(3.0 * v32 / (jnp.max(jnp.abs(v32)) + 1.0))

    # 1) small f32 tensor -> fused single-kernel path (no pad, no slice, no casts)
    B, C, H, W = 2, 4, 16, 16
    x = jax.random.uniform(k0, (B, C, H, W), jnp.float32, -2.0, 2.0)
    ref = ref_fn(x)
    y_fused = activation_forward(x)
    jax.block_until_ready(y_fused)
    assert y_fused.shape == x.shape and y_fused.dtype == x.dtype
    assert np.allclose(np.asarray(y_fused), np.asarray(ref), atol=1e-3, rtol=0.0)

    # 2) forced tiled two-pass path: parallel partial maxes + SMEM scale sweep
    y_tiled = activation_forward(x, block_rows=8, force_tiled=True)
    jax.block_until_ready(y_tiled)
    assert np.allclose(np.asarray(y_tiled), np.asarray(ref), atol=1e-3, rtol=0.0)

    # 3) ragged size (not a multiple of 8*128) with a partial final grid block
    x_ragged = jax.random.uniform(k1, (5, 3, 33, 17), jnp.float32, -3.0, 3.0)
    ref_ragged = ref_fn(x_ragged)
    y_ragged = activation_forward(x_ragged, block_rows=16, force_tiled=True)
    jax.block_until_ready(y_ragged)
    assert y_ragged.shape == x_ragged.shape
    assert np.allclose(np.asarray(y_ragged), np.asarray(ref_ragged), atol=1e-3, rtol=0.0)

    # 4) native bf16 end-to-end (no f32 round trip outside the kernel)
    x_bf = jax.random.uniform(k2, (B, C, H, W), jnp.float32, -2.0, 2.0).astype(jnp.bfloat16)
    ref_bf = ref_fn(x_bf)
    y_bf = activation_forward(x_bf)
    jax.block_until_ready(y_bf)
    assert y_bf.dtype == jnp.bfloat16 and y_bf.shape == x_bf.shape
    assert np.allclose(np.asarray(y_bf, dtype=np.float32), np.asarray(ref_bf),
                       atol=2e-2, rtol=0.0)

    print("KERNEL_OK")
</pallas_src>

<mosaic_0001>
module attributes {stable_mosaic.version = 11 : i64} {
  func.func @_act_fused_kernel(%arg0: memref<16x128xf32, #tpu.memory_space<vmem>>, %arg1: memref<16x128xf32, #tpu.memory_space<vmem>>) attributes {dimension_semantics = [], scalar_prefetch = 0 : i64, scratch_operands = 0 : i64, tpu.core_type = #tpu.core_type<tc>} {
    %c0 = arith.constant 0 : index
    %c0_0 = arith.constant 0 : index
    %0 = vector.load %arg0[%c0, %c0_0] : memref<16x128xf32, #tpu.memory_space<vmem>>, vector<16x128xf32>
    %1 = math.absf %0 : vector<16x128xf32>
    %2 = vector.shape_cast %1 : vector<16x128xf32> to vector<1x16x128xf32>
    %cst = arith.constant dense<0xFF800000> : vector<1xf32>
    %3 = vector.multi_reduction <maximumf>, %2, %cst [1, 2] : vector<1x16x128xf32> to vector<1xf32>
    %4 = vector.shape_cast %3 : vector<1xf32> to vector<1x1x1xf32>
    %5 = vector.extract %4[0, 0, 0] : f32 from vector<1x1x1xf32>
    %6 = vector.broadcast %5 : f32 to vector<1x1xf32>
    %cst_1 = arith.constant 1.000000e+00 : f32
    %7 = vector.broadcast %cst_1 : f32 to vector<1x1xf32>
    %8 = arith.addf %6, %7 : vector<1x1xf32>
    %cst_2 = arith.constant 3.000000e+00 : f32
    %9 = vector.broadcast %cst_2 : f32 to vector<1x1xf32>
    %10 = arith.divf %9, %8 : vector<1x1xf32>
    %11 = vector.broadcast %10 : vector<1x1xf32> to vector<16x128xf32>
    %12 = arith.mulf %0, %11 : vector<16x128xf32>
    %13 = math.tanh %12 : vector<16x128xf32>
    %c0_3 = arith.constant 0 : index
    %c0_4 = arith.constant 0 : index
    %14 = vector.load %arg1[%c0_3, %c0_4] : memref<16x128xf32, #tpu.memory_space<vmem>>, vector<16x128xf32>
    tpu.vector_store %arg1[%c0_3, %c0_4], %13 {strides = array<i32>} : memref<16x128xf32, #tpu.memory_space<vmem>>, vector<16x128xf32>,
    return
  }
}

</mosaic_0001>

<llo_original>
// kernel: activation_forward.1
$region0: #{activation_forward.1}
  #allocation0 [shape = 'u32[]', space=smem, size = 0x4, offset = 0x4, fixed_abs, tag = 'smem constant byte address 0x4 - core index']
  #allocation1 [shape = 'u32[72,128]{1,0:T(1,128)}', space=vmem, size = 0x9000, scoped, tag = 'internal scratch']
  %s0 = inlined_call_operand.vmem [shape: f32[16,128], index: 0, kind: input, shape index: {}]
  %s1 = inlined_call_operand.vmem [shape: f32[16,128], index: 1, kind: output, shape index: {}]
  %s2 = sld [smem:[#allocation0]]
  $region14: #{activation_forward.1} parent=0
    _
  %s4 = ssub.s32 1, %s2
  %s5 = scalar_select 0, %s4, %s2
  // Predicated region
  $region2: #{activation_forward.1} parent=0 // pred_check
    _
  $region3: #{activation_forward.1} parent=0 // pred_check_branch
    %7 = sbr.rel (0) target = $region5
  $region4: #{activation_forward.1} parent=0 // pred_region
    _
  $region5: #{activation_forward.1} parent=0 // pred_fallthru
    _
  %v8 = vld [vmem:[%s0] sm:$0xff]
  %v9 = vld [vmem:[%s0 + $0x8] sm:$0xff]
  %v10 = vand.u32 2147483647, %v8
  %v11 = vand.u32 2147483647, %v9
  %v12 = vmax.f32 %v10, %v11
  %13 = vmax.xlane.f32.xlu0 %v12
  %v14 = vpop.xlane.xlu0 %13
  %v15 = vrot.slane %v14, 4
  %v16 = vmax.f32 %v14, %v15
  %v17 = vrot.slane %v16, 2
  %v18 = vmax.f32 %v16, %v17
  %v19 = vrot.slane %v18, 1
  %v20 = vmax.f32 %v18, %v19
  %s21 = vtos %v20
  %v22 = vstv %s21
  %v23 = vadd.f32 %v22, 1.0
  %v24 = vrcp.pop %v23
  %v25 = vmul.f32 %v23, %v24
  %v26 = vsub.f32 1.0, %v25
  %v27 = vmul.f32 %v24, %v26
  %v28 = vadd.f32 %v24, %v27
  %vm29 = vweird.f32 %v23
  %vm30 = vweird.f32 %v24
  %vm31 = vmor %vm29, %vm30
  %v32 = vsel %vm31, %v24, %v28
  %v33 = vand.u32 2147483647, %v23
  %vm34 = vcmp.eq.f32.partialorder %v33, 8.507059e+37
  %v35 = vand.u32 %v23, 2147483648
  %v36 = vor.u32 1.1754944e-38, %v35
  %v37 = vsel %vm34, %v36, %v32
  %v38 = vmul.f32 3.0, %v37
  %v39 = vmul.f32 %v8, %v38
  %v40 = vmul.f32 %v9, %v38
  %v41 = vtanh.pop %v39
  %v42 = vtanh.pop %v40
  %43 = vst [vmem:[%s1] sm:$0xff] %v41
  %44 = vst [vmem:[%s1 + $0x8] sm:$0xff] %v42
  // Predicated region
  $region6: #{activation_forward.1} parent=0 // pred_check
    _
  $region7: #{activation_forward.1} parent=0 // pred_check_branch
    %46 = sbr.rel (0) target = $region9
  $region8: #{activation_forward.1} parent=0 // pred_region
    _
  $region9: #{activation_forward.1} parent=0 // pred_fallthru
    _
  // Predicated region
  $region10: #{activation_forward.1} parent=0 // pred_check
    _
  $region11: #{activation_forward.1} parent=0 // pred_check_branch
    %48 = sbr.rel (0) target = $region13
  $region12: #{activation_forward.1} parent=0 // pred_region
    _
  $region13: #{activation_forward.1} parent=0 // pred_fallthru
    _

</llo_original>
